<compile_context>
chip_gen: v5e
topology: v5e:2x2
jax: 0.10.0
libtpu: 0.0.40
codegen_flags: <defaults>
</compile_context>

<pallas_src>
import jax
import jax.numpy as jnp
from jax.experimental import pallas as pl
from jax.experimental.pallas import tpu as pltpu


def _sdropout_kernel(mask_ref, x_st_ref, x_sc_ref, x_st_out_ref, x_sc_out_ref):
    m = mask_ref[...]                                   # (1, 1, tile_F)
    # Broadcast the (batch, feature) mask across the sublane / T axis.
    x_st_out_ref[...] = (x_st_ref[...] * m).astype(x_st_out_ref.dtype)

    # x_sc_out block is T-invariant: compute it once on the first T step.
    @pl.when(pl.program_id(2) == 0)
    def _():
        x_sc_out_ref[...] = (x_sc_ref[...] * m).astype(x_sc_out_ref.dtype)


def _pick_tile_f(F):
    """Lane-dense feature tile: a multiple of 128 dividing F when possible."""
    if F % 128 == 0:
        for cand in (512, 384, 256, 128):
            if cand <= F and F % cand == 0:
                return cand
    return F  # small / unaligned F: use the full feature extent


def _pick_tile_t(T, tile_f, itemsize, target_bytes=2 * 1024 * 1024):
    """Largest T tile (multiple of 8, or full T) keeping x_st blocks ~<=2 MiB."""
    max_t = max(1, target_bytes // max(1, tile_f * itemsize))
    for cand in range(T, 0, -1):
        if T % cand != 0:
            continue
        if cand != T and cand % 8 != 0:
            continue
        if cand <= max_t:
            return cand
    return T


def sdropout_forward(x_st, x_sc, *, p_drop, seed=0, training=True):
    """Pallas implementation of sDropout.forward.

    x_st: [B, T, *feat], x_sc: [B, *feat]. Returns (x_st_out, x_sc_out).
    Covers layerType 1/2/3 uniformly (feature dims are flattened).
    """
    if not training or p_drop <= 0.0:
        # eval mode / no dropout: identity (same as the PyTorch module)
        return x_st, x_sc

    p_keep = 1.0 - float(p_drop)
    if p_keep <= 0.0:
        # p_drop == 1: everything is dropped (avoid the 1/0 scale).
        return jnp.zeros_like(x_st), jnp.zeros_like(x_sc)

    B, T = x_st.shape[0], x_st.shape[1]
    F = 1
    for d in x_sc.shape[1:]:
        F *= d

    # Flatten feature dims; give the per-(B, F) arrays a unit "T" axis so
    # their blocks keep (8, 128)-friendly trailing dims.
    x_st_f = x_st.reshape(B, T, F)
    x_sc_f = x_sc.reshape(B, 1, F)

    # mask = bernoulli(p_keep) / p_keep, shared by x_sc and all time steps.
    keep = jax.random.bernoulli(jax.random.PRNGKey(seed), p=p_keep,
                                shape=(B, 1, F))
    mask = keep.astype(x_st.dtype) * jnp.asarray(1.0 / p_keep, dtype=x_st.dtype)

    tile_f = _pick_tile_f(F)
    tile_t = _pick_tile_t(T, tile_f, jnp.dtype(x_st.dtype).itemsize)
    grid = (B, pl.cdiv(F, tile_f), pl.cdiv(T, tile_t))

    st_spec = pl.BlockSpec((1, tile_t, tile_f), lambda b, f, t: (b, t, f))
    sc_spec = pl.BlockSpec((1, 1, tile_f), lambda b, f, t: (b, 0, f))

    out_st_f, out_sc_f = pl.pallas_call(
        _sdropout_kernel,
        grid=grid,
        in_specs=[sc_spec, st_spec, sc_spec],        # mask, x_st, x_sc
        out_specs=(st_spec, sc_spec),                # x_st_out, x_sc_out
        out_shape=(
            jax.ShapeDtypeStruct((B, T, F), x_st.dtype),
            jax.ShapeDtypeStruct((B, 1, F), x_sc.dtype),
        ),
        compiler_params=pltpu.CompilerParams(
            dimension_semantics=("parallel", "parallel", "arbitrary")),
    )(mask, x_st_f, x_sc_f)

    return out_st_f.reshape(x_st.shape), out_sc_f.reshape(x_sc.shape)


if __name__ == "__main__":
    # layerType = 2 (conv1d-style): x_st [B, T, C, L], x_sc [B, C, L]
    B, T, C, L = 2, 8, 4, 16
    p_drop = 0.2
    seed = 1234

    key = jax.random.PRNGKey(0)
    k1, k2 = jax.random.split(key)
    x_st = jax.random.normal(k1, (B, T, C, L), dtype=jnp.float32)
    x_sc = jax.random.normal(k2, (B, C, L), dtype=jnp.float32)

    x_st_out, x_sc_out = sdropout_forward(
        x_st, x_sc, p_drop=p_drop, seed=seed, training=True)
    jax.block_until_ready((x_st_out, x_sc_out))

    # Verify against a pure-jnp reference built from the same mask.
    p_keep = 1.0 - p_drop
    keep = jax.random.bernoulli(jax.random.PRNGKey(seed), p=p_keep,
                                shape=(B, 1, C * L))
    mask = keep.astype(jnp.float32) / p_keep
    ref_sc = (x_sc.reshape(B, 1, C * L) * mask).reshape(x_sc.shape)
    ref_st = (x_st.reshape(B, T, C * L) * mask).reshape(x_st.shape)
    assert bool(jnp.allclose(x_sc_out, ref_sc, rtol=1e-6, atol=1e-6))
    assert bool(jnp.allclose(x_st_out, ref_st, rtol=1e-6, atol=1e-6))

    # Eval mode is identity.
    e_st, e_sc = sdropout_forward(x_st, x_sc, p_drop=p_drop, seed=seed,
                                  training=False)
    assert bool(jnp.all(e_st == x_st)) and bool(jnp.all(e_sc == x_sc))

    print("KERNEL_OK")
</pallas_src>

<mosaic_0001>
module attributes {stable_mosaic.version = 11 : i64} {
  func.func @_sdropout_kernel(%arg0: i32, %arg1: i32, %arg2: i32, %arg3: memref<1x1x64xf32, #tpu.memory_space<vmem>>, %arg4: memref<1x8x64xf32, #tpu.memory_space<vmem>>, %arg5: memref<1x1x64xf32, #tpu.memory_space<vmem>>, %arg6: memref<1x8x64xf32, #tpu.memory_space<vmem>>, %arg7: memref<1x1x64xf32, #tpu.memory_space<vmem>>) attributes {dimension_semantics = [#tpu.dimension_semantics<parallel>, #tpu.dimension_semantics<parallel>, #tpu.dimension_semantics<arbitrary>], iteration_bounds = array<i64: 2, 1, 1>, scalar_prefetch = 0 : i64, scratch_operands = 0 : i64, tpu.core_type = #tpu.core_type<tc>, window_params = [{transform_indices = @transform_0, window_bounds = array<i64: 1, 1, 64>}, {transform_indices = @transform_1, window_bounds = array<i64: 1, 8, 64>}, {transform_indices = @transform_2, window_bounds = array<i64: 1, 1, 64>}, {transform_indices = @transform_3, window_bounds = array<i64: 1, 8, 64>}, {transform_indices = @transform_4, window_bounds = array<i64: 1, 1, 64>}]} {
    %c0 = arith.constant 0 : index
    %c0_0 = arith.constant 0 : index
    %c0_1 = arith.constant 0 : index
    %0 = vector.load %arg3[%c0, %c0_0, %c0_1] : memref<1x1x64xf32, #tpu.memory_space<vmem>>, vector<1x1x64xf32>
    %c0_2 = arith.constant 0 : index
    %c0_3 = arith.constant 0 : index
    %c0_4 = arith.constant 0 : index
    %1 = vector.load %arg4[%c0_2, %c0_3, %c0_4] : memref<1x8x64xf32, #tpu.memory_space<vmem>>, vector<1x8x64xf32>
    %2 = vector.broadcast %0 : vector<1x1x64xf32> to vector<1x8x64xf32>
    %3 = arith.mulf %1, %2 : vector<1x8x64xf32>
    %c0_5 = arith.constant 0 : index
    %c0_6 = arith.constant 0 : index
    %c0_7 = arith.constant 0 : index
    %4 = vector.load %arg6[%c0_5, %c0_6, %c0_7] : memref<1x8x64xf32, #tpu.memory_space<vmem>>, vector<1x8x64xf32>
    tpu.vector_store %arg6[%c0_5, %c0_6, %c0_7], %3 {strides = array<i32>} : memref<1x8x64xf32, #tpu.memory_space<vmem>>, vector<1x8x64xf32>,
    %c0_i32 = arith.constant 0 : i32
    %5 = arith.cmpi eq, %arg2, %c0_i32 : i32
    %6 = arith.extui %5 : i1 to i32
    %c0_i32_8 = arith.constant 0 : i32
    %7 = arith.cmpi ne, %6, %c0_i32_8 : i32
    scf.if %7 {
      %c0_9 = arith.constant 0 : index
      %c0_10 = arith.constant 0 : index
      %c0_11 = arith.constant 0 : index
      %8 = vector.load %arg5[%c0_9, %c0_10, %c0_11] : memref<1x1x64xf32, #tpu.memory_space<vmem>>, vector<1x1x64xf32>
      %9 = arith.mulf %8, %0 : vector<1x1x64xf32>
      %c0_12 = arith.constant 0 : index
      %c0_13 = arith.constant 0 : index
      %c0_14 = arith.constant 0 : index
      %10 = vector.load %arg7[%c0_12, %c0_13, %c0_14] : memref<1x1x64xf32, #tpu.memory_space<vmem>>, vector<1x1x64xf32>
      tpu.vector_store %arg7[%c0_12, %c0_13, %c0_14], %9 {strides = array<i32>} : memref<1x1x64xf32, #tpu.memory_space<vmem>>, vector<1x1x64xf32>,
    } else {
    }
    return
  }
  func.func @transform_0(%arg0: i32, %arg1: i32, %arg2: i32) -> (i32, i32, i32) {
    %c0_i32 = arith.constant 0 : i32
    %c0_i32_0 = arith.constant 0 : i32
    return %arg0, %c0_i32, %arg1 : i32, i32, i32
  }
  func.func @transform_1(%arg0: i32, %arg1: i32, %arg2: i32) -> (i32, i32, i32) {
    %c0_i32 = arith.constant 0 : i32
    return %arg0, %arg2, %arg1 : i32, i32, i32
  }
  func.func @transform_2(%arg0: i32, %arg1: i32, %arg2: i32) -> (i32, i32, i32) {
    %c0_i32 = arith.constant 0 : i32
    %c0_i32_0 = arith.constant 0 : i32
    return %arg0, %c0_i32, %arg1 : i32, i32, i32
  }
  func.func @transform_3(%arg0: i32, %arg1: i32, %arg2: i32) -> (i32, i32, i32) {
    %c0_i32 = arith.constant 0 : i32
    return %arg0, %arg2, %arg1 : i32, i32, i32
  }
  func.func @transform_4(%arg0: i32, %arg1: i32, %arg2: i32) -> (i32, i32, i32) {
    %c0_i32 = arith.constant 0 : i32
    %c0_i32_0 = arith.constant 0 : i32
    return %arg0, %c0_i32, %arg1 : i32, i32, i32
  }
}

</mosaic_0001>

<llo_original>
// kernel: tpu_custom_call.1
$region0: #{tpu_custom_call.1}
  #allocation0 [shape = 'u32[]', space=smem, size = 0x4, offset = 0x4, fixed_abs, tag = 'smem constant byte address 0x4 - core index']
  #allocation1 [shape = 'u32[72,128]{1,0:T(1,128)}', space=vmem, size = 0x9000, scoped, tag = 'internal scratch']
  %s0 = inlined_call_operand.hbm [shape: f32[2,1,64], index: 0, kind: input, shape index: {}]
  %s1 = inlined_call_operand.hbm [shape: f32[2,8,64], index: 1, kind: input, shape index: {}]
  %s2 = inlined_call_operand.hbm [shape: f32[2,1,64], index: 2, kind: input, shape index: {}]
  %s3 = inlined_call_operand.hbm [shape: f32[2,8,64], index: 3, kind: output, shape index: {0}]
  %s4 = inlined_call_operand.hbm [shape: f32[2,1,64], index: 4, kind: output, shape index: {1}]
  %5 = xla_tuple %s3, %s4
  %s6 = sld [smem:[#allocation0]]
  $region69: #{tpu_custom_call.1} parent=0
    _
  %s8 = ssub.s32 1, %s6
  %s9 = scalar_select 0, %s8, %s6
  $region1: #{tpu_custom_call.1} parent=0
    #allocation2 [shape = 'u8[1024]{0}', space=vmem, size = 0x400, scoped, tag = 'input window, operand 0']
    #allocation3 [shape = 's32[2]{0}', space=sflag, size = 0x8, scoped, tag = 'scoped memory for tpu_custom_call.1']
    #allocation4 [shape = 's32[2]{0}', space=sflag, size = 0x8, scoped, tag = 'scoped memory for tpu_custom_call.1']
    #allocation5 [shape = 'u8[8192]{0}', space=vmem, size = 0x2000, scoped, tag = 'input window, operand 1']
    #allocation6 [shape = 's32[2]{0}', space=sflag, size = 0x8, scoped, tag = 'scoped memory for tpu_custom_call.1']
    #allocation7 [shape = 'u8[1024]{0}', space=vmem, size = 0x400, scoped, tag = 'input window, operand 2']
    #allocation8 [shape = 'u8[8192]{0}', space=vmem, size = 0x2000, scoped, tag = 'output window, operand 0']
    #allocation9 [shape = 'u8[1024]{0}', space=vmem, size = 0x400, scoped, tag = 'output window, operand 1']
    #allocation10 [shape = 's32[2]{0}', space=sflag, size = 0x8, scoped, tag = 'scoped memory for tpu_custom_call.1']
    %10 = vsyncpa [#allocation3], 0
    %s11 = scalar_lea.sflag [#allocation3], 1
    %12 = vsyncpa %s11, 0
    %13 = vsyncpa [#allocation6], 0
    %s14 = scalar_lea.sflag [#allocation6], 1
    %15 = vsyncpa %s14, 0
    %16 = vsyncpa [#allocation4], 0
    %s17 = scalar_lea.sflag [#allocation4], 1
    %18 = vsyncpa %s17, 0
    %19 = vsyncpa [#allocation10], 0
    %s20 = scalar_lea.sflag [#allocation10], 1
    %21 = vsyncpa %s20, 0
    loop: start=0, step=1, limit=4
    $region2: #{tpu_custom_call.1} parent=1 // loop_pre_header
      _
    $region3: #{tpu_custom_call.1} parent=1 // loop_header
      %s23 = sphi 0, %s27
      %p24 = scmp.ge.s32.totalorder %s23, 4
      %s30 = sphi 0, %s49
      %s31 = sphi 0, %s45
      %s32 = sphi 0, %s41
      %s33 = sphi 0, %s30
      %s34 = sphi 0, %s31
      %s35 = sphi 0, %s32
      %s36 = sphi 0, %s33
      %s37 = sphi 0, %s34
      %s38 = sphi 0, %s35
      %s54 = sphi 0, %s56
      %s57 = sphi 0, %s54
      %s58 = sphi 0, %s57
      %s74 = sphi 0, %s58
      %s84 = sphi 0, %s86
      %s87 = sphi 0, %s84
      %s88 = sphi 0, %s87
      %s104 = sphi 0, %s88
      %s112 = sphi 0, %s114
      %s115 = sphi 0, %s112
      %s116 = sphi 0, %s115
      %s132 = sphi 0, %s116
      %s142 = sphi 0, %s144
      %s145 = sphi 0, %s142
      %s146 = sphi 0, %s145
      %s162 = sphi 0, %s146
      %s170 = sphi 0, %s172
      %s173 = sphi 0, %s170
      %s174 = sphi 0, %s173
      %s190 = sphi 0, %s174
    $region4: #{tpu_custom_call.1} parent=1 // loop_header_branch
      %26 = sbr.rel (%p24) target = $region8
    $region5: #{tpu_custom_call.1} parent=1 // loop_body
      %s28 = ssub.s32 %s23, 1
      %s29 = ssub.s32 %s23, 2
      %s39 = sadd.s32 1, %s32
      %p40 = scmp.ge.s32.totalorder %s39, 1
      %s41 = scalar_select %p40, 0, %s39
      %s42 = sadd.s32 1, %s31
      %s43 = scalar_select %p40, %s42, %s31
      %p44 = scmp.ge.s32.totalorder %s43, 1
      %s45 = scalar_select %p44, 0, %s43
      %s46 = sadd.s32 1, %s30
      %s47 = scalar_select %p44, %s46, %s30
      %p48 = scmp.ge.s32.totalorder %s47, 2
      %s49 = scalar_select %p48, 0, %s47
      %s50 = ssub.s32 %s30, %s49
      %s51 = ssub.s32 %s31, %s45
      %s52 = sor.u32 %s50, %s51
      %p53 = scmp.eq.s32.totalorder %s52, 0
      %s55 = sadd.s32 %s54, 1
      %s56 = scalar_select %p53, %s54, %s55
      %p59 = pneg %p53
      %p60 = scmp.eq.s32.totalorder %s23, 1
      %p61 = por %p59, %p60
      %p62 = scmp.ne.s32.totalorder %s54, %s57
      %p63 = scmp.eq.s32.totalorder %s23, 0
      %p64 = por %p62, %p63
      %p65 = scmp.ne.s32.totalorder %s54, %s57
      %p66 = scmp.eq.s32.totalorder %s28, 1
      %p67 = por %p65, %p66
      %p68 = scmp.ne.s32.totalorder %s57, %s58
      %p69 = scmp.eq.s32.totalorder %s28, 0
      %p70 = por %p68, %p69
      %p71 = scmp.ne.s32.totalorder %s57, %s58
      %p72 = scmp.eq.s32.totalorder %s29, 1
      %p73 = por %p71, %p72
      %p75 = scmp.ne.s32.totalorder %s58, %s74
      %p76 = scmp.eq.s32.totalorder %s29, 0
      %p77 = por %p75, %p76
      %s78 = ssub.s32 %s30, %s49
      %s79 = ssub.s32 %s32, %s41
      %s80 = sor.u32 %s78, %s79
      %s81 = ssub.s32 %s31, %s45
      %s82 = sor.u32 %s80, %s81
      %p83 = scmp.eq.s32.totalorder %s82, 0
      %s85 = sadd.s32 %s84, 1
      %s86 = scalar_select %p83, %s84, %s85
      %p89 = pneg %p83
      %p90 = scmp.eq.s32.totalorder %s23, 1
      %p91 = por %p89, %p90
      %p92 = scmp.ne.s32.totalorder %s84, %s87
      %p93 = scmp.eq.s32.totalorder %s23, 0
      %p94 = por %p92, %p93
      %p95 = scmp.ne.s32.totalorder %s84, %s87
      %p96 = scmp.eq.s32.totalorder %s28, 1
      %p97 = por %p95, %p96
      %p98 = scmp.ne.s32.totalorder %s87, %s88
      %p99 = scmp.eq.s32.totalorder %s28, 0
      %p100 = por %p98, %p99
      %p101 = scmp.ne.s32.totalorder %s87, %s88
      %p102 = scmp.eq.s32.totalorder %s29, 1
      %p103 = por %p101, %p102
      %p105 = scmp.ne.s32.totalorder %s88, %s104
      %p106 = scmp.eq.s32.totalorder %s29, 0
      %p107 = por %p105, %p106
      %s108 = ssub.s32 %s30, %s49
      %s109 = ssub.s32 %s31, %s45
      %s110 = sor.u32 %s108, %s109
      %p111 = scmp.eq.s32.totalorder %s110, 0
      %s113 = sadd.s32 %s112, 1
      %s114 = scalar_select %p111, %s112, %s113
      %p117 = pneg %p111
      %p118 = scmp.eq.s32.totalorder %s23, 1
      %p119 = por %p117, %p118
      %p120 = scmp.ne.s32.totalorder %s112, %s115
      %p121 = scmp.eq.s32.totalorder %s23, 0
      %p122 = por %p120, %p121
      %p123 = scmp.ne.s32.totalorder %s112, %s115
      %p124 = scmp.eq.s32.totalorder %s28, 1
      %p125 = por %p123, %p124
      %p126 = scmp.ne.s32.totalorder %s115, %s116
      %p127 = scmp.eq.s32.totalorder %s28, 0
      %p128 = por %p126, %p127
      %p129 = scmp.ne.s32.totalorder %s115, %s116
      %p130 = scmp.eq.s32.totalorder %s29, 1
      %p131 = por %p129, %p130
      %p133 = scmp.ne.s32.totalorder %s116, %s132
      %p134 = scmp.eq.s32.totalorder %s29, 0
      %p135 = por %p133, %p134
      %s136 = ssub.s32 %s30, %s49
      %s137 = ssub.s32 %s32, %s41
      %s138 = sor.u32 %s136, %s137
      %s139 = ssub.s32 %s31, %s45
      %s140 = sor.u32 %s138, %s139
      %p141 = scmp.eq.s32.totalorder %s140, 0
      %s143 = sadd.s32 %s142, 1
      %s144 = scalar_select %p141, %s142, %s143
      %p147 = pneg %p141
      %p148 = scmp.eq.s32.totalorder %s23, 1
      %p149 = por %p147, %p148
      %p150 = scmp.ne.s32.totalorder %s142, %s145
      %p151 = scmp.eq.s32.totalorder %s23, 0
      %p152 = por %p150, %p151
      %p153 = scmp.ne.s32.totalorder %s142, %s145
      %p154 = scmp.eq.s32.totalorder %s28, 1
      %p155 = por %p153, %p154
      %p156 = scmp.ne.s32.totalorder %s145, %s146
      %p157 = scmp.eq.s32.totalorder %s28, 0
      %p158 = por %p156, %p157
      %p159 = scmp.ne.s32.totalorder %s145, %s146
      %p160 = scmp.eq.s32.totalorder %s29, 1
      %p161 = por %p159, %p160
      %p163 = scmp.ne.s32.totalorder %s146, %s162
      %p164 = scmp.eq.s32.totalorder %s29, 0
      %p165 = por %p163, %p164
      %s166 = ssub.s32 %s30, %s49
      %s167 = ssub.s32 %s31, %s45
      %s168 = sor.u32 %s166, %s167
      %p169 = scmp.eq.s32.totalorder %s168, 0
      %s171 = sadd.s32 %s170, 1
      %s172 = scalar_select %p169, %s170, %s171
      %p175 = pneg %p169
      %p176 = scmp.eq.s32.totalorder %s23, 1
      %p177 = por %p175, %p176
      %p178 = scmp.ne.s32.totalorder %s170, %s173
      %p179 = scmp.eq.s32.totalorder %s23, 0
      %p180 = por %p178, %p179
      %p181 = scmp.ne.s32.totalorder %s170, %s173
      %p182 = scmp.eq.s32.totalorder %s28, 1
      %p183 = por %p181, %p182
      %p184 = scmp.ne.s32.totalorder %s173, %s174
      %p185 = scmp.eq.s32.totalorder %s28, 0
      %p186 = por %p184, %p185
      %p187 = scmp.ne.s32.totalorder %s173, %s174
      %p188 = scmp.eq.s32.totalorder %s29, 1
      %p189 = por %p187, %p188
      %p191 = scmp.ne.s32.totalorder %s174, %s190
      %p192 = scmp.eq.s32.totalorder %s29, 0
      %p193 = por %p191, %p192
      %p194 = scmp.le.s32.totalorder 1, %s23
      %p195 = scmp.lt.s32.totalorder %s23, 3
      %p196 = pnand %p194, %p195
      %p197 = pneg %p196
      // Predicated region
      $region9: #{tpu_custom_call.1} parent=5 // pred_check
        _
      $region10: #{tpu_custom_call.1} parent=5 // pred_check_branch
        %199 = sbr.rel (%p196) target = $region12
      $region11: #{tpu_custom_call.1} parent=5 // pred_region
        %s200 = ssub.s32 %s23, 1
      $region12: #{tpu_custom_call.1} parent=5 // pred_fallthru
        _
      %p201 = scmp.lt.s32.totalorder %s23, 2
      // Predicated region
      $region13: #{tpu_custom_call.1} parent=5 // pred_check
        %p202 = pneg %p201
      $region14: #{tpu_custom_call.1} parent=5 // pred_check_branch
        %204 = sbr.rel (%p202) target = $region16
      $region15: #{tpu_custom_call.1} parent=5 // pred_region
        // Predicated region
        $region17: #{tpu_custom_call.1} parent=15 // pred_check
          %p205 = pneg %p64
        $region18: #{tpu_custom_call.1} parent=15 // pred_check_branch
          %207 = sbr.rel (%p205) target = $region20
        $region19: #{tpu_custom_call.1} parent=15 // pred_region
          %s208 = sand.u32 %s54, 1
          %s209 = scalar_lea.sflag [#allocation3], %s208
          %s210 = sand.u32 %s54, 1
          %s211 = scalar_lea.vmem [#allocation2], %s210
          %213 = vsyncadd %s209, 0
          %s214 = sadd.s32 %s31, %s30
          %s215 = scalar_lea.hbm %s0, %s214
          %s217 = sshll.u32 %s215, 4
          %s218 = int_to_ptr.hbm [resolvable:$true] %s217
          %s219 = sshll.u32 %s211, 4
          %s220 = int_to_ptr.vmem [resolvable:$true] %s219
          %222 = dma.hbm_to_vmem [thread:$0]  %s218, 16, %s220, %s209
        $region20: #{tpu_custom_call.1} parent=15 // pred_fallthru
          _
        // Predicated region
        $region21: #{tpu_custom_call.1} parent=15 // pred_check
          %p223 = pneg %p94
        $region22: #{tpu_custom_call.1} parent=15 // pred_check_branch
          %225 = sbr.rel (%p223) target = $region24
        $region23: #{tpu_custom_call.1} parent=15 // pred_region
          %s226 = sand.u32 %s23, 1
          %s227 = scalar_lea.sflag [#allocation6], %s226
          %s228 = sand.u32 %s84, 1
          %s229 = smul.addr %s228, 8
          %s230 = scalar_lea.vmem [#allocation5], %s229
          %232 = vsyncadd %s227, 0
          %s233 = sadd.s32 %s31, %s32
          %s234 = sadd.s32 %s233, %s30
          %s235 = smul.addr %s234, 8
          %s236 = scalar_lea.hbm %s1, %s235
          %s238 = sshll.u32 %s236, 4
          %s239 = int_to_ptr.hbm [resolvable:$true] %s238
          %s240 = sshll.u32 %s230, 4
          %s241 = int_to_ptr.vmem [resolvable:$true] %s240
          %243 = dma.hbm_to_vmem [thread:$0]  %s239, 128, %s241, %s227
        $region24: #{tpu_custom_call.1} parent=15 // pred_fallthru
          _
        // Predicated region
        $region25: #{tpu_custom_call.1} parent=15 // pred_check
          %p244 = pneg %p122
        $region26: #{tpu_custom_call.1} parent=15 // pred_check_branch
          %246 = sbr.rel (%p244) target = $region28
        $region27: #{tpu_custom_call.1} parent=15 // pred_region
          %s247 = sand.u32 %s23, 1
          %s248 = scalar_lea.sflag [#allocation6], %s247
          %s249 = sand.u32 %s112, 1
          %s250 = scalar_lea.vmem [#allocation7], %s249
          %252 = vsyncadd %s248, 0
          %s253 = sadd.s32 %s31, %s30
          %s254 = scalar_lea.hbm %s2, %s253
          %s256 = sshll.u32 %s254, 4
          %s257 = int_to_ptr.hbm [resolvable:$true] %s256
          %s258 = sshll.u32 %s250, 4
          %s259 = int_to_ptr.vmem [resolvable:$true] %s258
          %261 = dma.hbm_to_vmem [thread:$0]  %s257, 16, %s259, %s248
        $region28: #{tpu_custom_call.1} parent=15 // pred_fallthru
          _
      $region16: #{tpu_custom_call.1} parent=5 // pred_fallthru
        _
      %p262 = scmp.le.s32.totalorder 1, %s23
      %p263 = scmp.lt.s32.totalorder %s23, 3
      %p264 = pnand %p262, %p263
      %p265 = pneg %p264
      // Predicated region
      $region29: #{tpu_custom_call.1} parent=5 // pred_check
        _
      $region30: #{tpu_custom_call.1} parent=5 // pred_check_branch
        %267 = sbr.rel (%p264) target = $region32
      $region31: #{tpu_custom_call.1} parent=5 // pred_region
        %s268 = ssub.s32 %s23, 1
        %s269 = sand.u32 %s57, 1
        %s270 = scalar_lea.sflag [#allocation3], %s269
        %s271 = sand.u32 %s57, 1
        %s272 = scalar_lea.vmem [#allocation2], %s271
        // Predicated region
        $region33: #{tpu_custom_call.1} parent=31 // pred_check
          %p273 = pneg %p70
        $region34: #{tpu_custom_call.1} parent=31 // pred_check_branch
          %275 = sbr.rel (%p273) target = $region36
        $region35: #{tpu_custom_call.1} parent=31 // pred_region
          %277 = dma.done %s270, 16
        $region36: #{tpu_custom_call.1} parent=31 // pred_fallthru
          _
        %s278 = sand.u32 %s28, 1
        %s279 = scalar_lea.sflag [#allocation6], %s278
        %s280 = sand.u32 %s87, 1
        %s281 = smul.addr %s280, 8
        %s282 = scalar_lea.vmem [#allocation5], %s281
        // Predicated region
        $region37: #{tpu_custom_call.1} parent=31 // pred_check
          %p283 = pneg %p100
        $region38: #{tpu_custom_call.1} parent=31 // pred_check_branch
          %285 = sbr.rel (%p283) target = $region40
        $region39: #{tpu_custom_call.1} parent=31 // pred_region
          %287 = dma.done %s279, 128
        $region40: #{tpu_custom_call.1} parent=31 // pred_fallthru
          _
        %s288 = sand.u32 %s28, 1
        %s289 = scalar_lea.sflag [#allocation6], %s288
        %s290 = sand.u32 %s115, 1
        %s291 = scalar_lea.vmem [#allocation7], %s290
        // Predicated region
        $region41: #{tpu_custom_call.1} parent=31 // pred_check
          %p292 = pneg %p128
        $region42: #{tpu_custom_call.1} parent=31 // pred_check_branch
          %294 = sbr.rel (%p292) target = $region44
        $region43: #{tpu_custom_call.1} parent=31 // pred_region
          %296 = dma.done %s289, 16
        $region44: #{tpu_custom_call.1} parent=31 // pred_fallthru
          _
        %s297 = sand.u32 %s57, 1
        %s298 = scalar_lea.sflag [#allocation3], %s297
        %s299 = sand.u32 %s57, 1
        %s300 = scalar_lea.vmem [#allocation2], %s299
        %p301 = pneg %p70
        %p302 = pneg %p67
        %s303 = sand.u32 %s28, 1
        %s304 = scalar_lea.sflag [#allocation6], %s303
        %s305 = sand.u32 %s87, 1
        %s306 = smul.addr %s305, 8
        %s307 = scalar_lea.vmem [#allocation5], %s306
        %p308 = pneg %p100
        %p309 = pneg %p97
        %s310 = sand.u32 %s28, 1
        %s311 = scalar_lea.sflag [#allocation6], %s310
        %s312 = sand.u32 %s115, 1
        %s313 = scalar_lea.vmem [#allocation7], %s312
        %p314 = pneg %p128
        %p315 = pneg %p125
        %p316 = pneg %p158
        %p317 = pneg %p155
        %s318 = sand.u32 %s145, 1
        %s319 = scalar_lea.sflag [#allocation4], %s318
        %s320 = sand.u32 %s145, 1
        %s321 = smul.addr %s320, 8
        %s322 = scalar_lea.vmem [#allocation8], %s321
        %p323 = pneg %p186
        %p324 = pneg %p183
        %s325 = sand.u32 %s173, 1
        %s326 = scalar_lea.sflag [#allocation10], %s325
        %s327 = sand.u32 %s173, 1
        %s328 = scalar_lea.vmem [#allocation9], %s327
        %v329 = vld [vmem:[%s272] sm:$0x1]
        %v330 = vld [vmem:[%s282] sm:$0xff]
        %v332 = vperm.slane %v329, 0
        %v334 = vmul.f32 %v330, %v332
        %vm335 = vcmask 523264
        %336 = vst.msk [vmem:[%s322] sm:$0xff] %vm335, %v334
        %p337 = scmp.eq.s32.totalorder %s35, 0
        // Predicated region
        $region45: #{tpu_custom_call.1} parent=31 // pred_check
          %p338 = pneg %p337
        $region46: #{tpu_custom_call.1} parent=31 // pred_check_branch
          %340 = sbr.rel (%p338) target = $region48
        $region47: #{tpu_custom_call.1} parent=31 // pred_region
          %v341 = vld [vmem:[%s291] sm:$0x1]
          %v342 = vmul.f32 %v341, %v329
          %vm343 = vcmask 516096
          %344 = vst.msk [vmem:[%s328] sm:$0x1] %vm343, %v342
        $region48: #{tpu_custom_call.1} parent=31 // pred_fallthru
          _
        %s345 = sand.u32 %s145, 1
        %s346 = scalar_lea.sflag [#allocation4], %s345
        %s347 = sand.u32 %s145, 1
        %s348 = smul.addr %s347, 8
        %s349 = scalar_lea.vmem [#allocation8], %s348
        %s350 = sand.u32 %s173, 1
        %s351 = scalar_lea.sflag [#allocation10], %s350
        %s352 = sand.u32 %s173, 1
        %s353 = scalar_lea.vmem [#allocation9], %s352
        // Predicated region
        $region49: #{tpu_custom_call.1} parent=31 // pred_check
          %p354 = pneg %p155
        $region50: #{tpu_custom_call.1} parent=31 // pred_check_branch
          %356 = sbr.rel (%p354) target = $region52
        $region51: #{tpu_custom_call.1} parent=31 // pred_region
          %358 = vsyncadd %s346, 0
          %s359 = sadd.s32 %s34, %s35
          %s360 = sadd.s32 %s359, %s33
          %s361 = smul.addr %s360, 8
          %s362 = scalar_lea.hbm %s3, %s361
          %s364 = sshll.u32 %s349, 4
          %s365 = int_to_ptr.vmem [resolvable:$true] %s364
          %s366 = sshll.u32 %s362, 4
          %s367 = int_to_ptr.hbm [resolvable:$true] %s366
          %369 = dma.vmem_to_hbm [thread:$0]  %s365, 128, %s367, %s346
        $region52: #{tpu_custom_call.1} parent=31 // pred_fallthru
          _
        // Predicated region
        $region53: #{tpu_custom_call.1} parent=31 // pred_check
          %p370 = pneg %p183
        $region54: #{tpu_custom_call.1} parent=31 // pred_check_branch
          %372 = sbr.rel (%p370) target = $region56
        $region55: #{tpu_custom_call.1} parent=31 // pred_region
          %374 = vsyncadd %s351, 0
          %s375 = sadd.s32 %s34, %s33
          %s376 = scalar_lea.hbm %s4, %s375
          %s378 = sshll.u32 %s353, 4
          %s379 = int_to_ptr.vmem [resolvable:$true] %s378
          %s380 = sshll.u32 %s376, 4
          %s381 = int_to_ptr.hbm [resolvable:$true] %s380
          %383 = dma.vmem_to_hbm [thread:$0]  %s379, 16, %s381, %s351
        $region56: #{tpu_custom_call.1} parent=31 // pred_fallthru
          _
      $region32: #{tpu_custom_call.1} parent=5 // pred_fallthru
        _
      %p384 = scmp.le.s32.totalorder 2, %s23
      // Predicated region
      $region57: #{tpu_custom_call.1} parent=5 // pred_check
        %p385 = pneg %p384
      $region58: #{tpu_custom_call.1} parent=5 // pred_check_branch
        %387 = sbr.rel (%p385) target = $region60
      $region59: #{tpu_custom_call.1} parent=5 // pred_region
        %s388 = ssub.s32 %s23, 2
        // Predicated region
        $region61: #{tpu_custom_call.1} parent=59 // pred_check
          %p389 = pneg %p161
        $region62: #{tpu_custom_call.1} parent=59 // pred_check_branch
          %391 = sbr.rel (%p389) target = $region64
        $region63: #{tpu_custom_call.1} parent=59 // pred_region
          %s392 = sand.u32 %s146, 1
          %s393 = scalar_lea.sflag [#allocation4], %s392
          %s394 = sand.u32 %s146, 1
          %s395 = smul.addr %s394, 8
          %s396 = scalar_lea.vmem [#allocation8], %s395
          %398 = dma.done %s393, 128
        $region64: #{tpu_custom_call.1} parent=59 // pred_fallthru
          _
        // Predicated region
        $region65: #{tpu_custom_call.1} parent=59 // pred_check
          %p399 = pneg %p189
        $region66: #{tpu_custom_call.1} parent=59 // pred_check_branch
          %401 = sbr.rel (%p399) target = $region68
        $region67: #{tpu_custom_call.1} parent=59 // pred_region
          %s402 = sand.u32 %s174, 1
          %s403 = scalar_lea.sflag [#allocation10], %s402
          %s404 = sand.u32 %s174, 1
          %s405 = scalar_lea.vmem [#allocation9], %s404
          %407 = dma.done %s403, 16
        $region68: #{tpu_custom_call.1} parent=59 // pred_fallthru
          _
      $region60: #{tpu_custom_call.1} parent=5 // pred_fallthru
        _
    $region6: #{tpu_custom_call.1} parent=1 // loop_footer
      %s27 = sadd.s32 1, %s23
    $region7: #{tpu_custom_call.1} parent=1 // loop_footer_branch
      %22 = sbr.rel target = $region3
    $region8: #{tpu_custom_call.1} parent=1 // loop_exit
      _
    %408 = vsyncpa [#allocation3], 1
    %s409 = scalar_lea.sflag [#allocation3], 1
    %410 = vsyncpa %s409, 1
    %411 = vsyncpa [#allocation6], 1
    %s412 = scalar_lea.sflag [#allocation6], 1
    %413 = vsyncpa %s412, 1
    %414 = vsyncpa [#allocation4], 1
    %s415 = scalar_lea.sflag [#allocation4], 1
    %416 = vsyncpa %s415, 1
    %417 = vsyncpa [#allocation10], 1
    %s418 = scalar_lea.sflag [#allocation10], 1
    %419 = vsyncpa %s418, 1

</llo_original>
